<compile_context>
chip_gen: v6e
topology: v6e:2x2x1
jax: 0.10.0
libtpu: 0.0.40
codegen_flags: <defaults>
</compile_context>

<pallas_src>
import functools

import jax
import jax.numpy as jnp
from jax import lax
from jax.experimental import pallas as pl
from jax.experimental.pallas import tpu as pltpu


def _round_up(x, m):
    return (x + m - 1) // m * m


def _euclidean_loss_kernel(emb_r_ref, emb_ct_ref, lab_c_ref, nrm_c_ref,
                           out_ref, lab_row_scr, nrm_row_scr, *,
                           margin, n, tile, T, K, dup_last, need_iota_mask):
    # emb_r_ref : (tile, d_pad)  native dtype, row tile i (constant across jj)
    # emb_ct_ref: (d_pad, tile)  native dtype, column tile (i + jj) % T
    # lab_c_ref : (1, tile) int32, nrm_c_ref: (1, tile) f32  (column tile)
    # out_ref   : (1, 1, tile) f32 resident accumulator for row tile i
    # lab_row_scr / nrm_row_scr: (tile, 1) scratch, filled once per row tile.
    i = pl.program_id(0)
    jj = pl.program_id(1)

    @pl.when(jj == 0)
    def _init():
        # At jj == 0 the column tile IS the row tile ((i + 0) % T == i), so
        # hoist the transposed row labels / row norms into scratch once per
        # row tile and zero the resident lane-dense accumulator.
        out_ref[...] = jnp.zeros_like(out_ref)
        lab_row_scr[...] = jnp.transpose(lab_c_ref[...])   # (tile, 1) int32
        nrm_row_scr[...] = jnp.transpose(nrm_c_ref[...])   # (tile, 1) f32

    # MXU: (tile, d) @ (d, tile) -> (tile, tile), f32 accumulation.
    gram = jnp.dot(emb_r_ref[...], emb_ct_ref[...],
                   preferred_element_type=jnp.float32)

    # ||x_i - x_j||^2 = ||x_i||^2 + ||x_j||^2 - 2 <x_i, x_j>
    dist2 = nrm_row_scr[...] + nrm_c_ref[...] - 2.0 * gram      # (tile, tile)
    dist = jnp.sqrt(jnp.maximum(dist2, 1e-12))                  # clamp(min).sqrt()

    if margin:                         # static python branch (margin is float)
        margin_dist = jnp.maximum(margin - dist, 0.0)
    else:
        margin_dist = -dist

    # Negative-pair mask: labels differ. (tile,1) vs (1,tile) -> (tile,tile).
    neg = lab_row_scr[...] != lab_c_ref[...]

    if need_iota_mask:
        # Only for the margin == 0 path (otherwise padded rows are already
        # neutralized by the sentinel norm set in the wrapper).
        col0 = ((i + jj) % T) * tile
        row_ok = (lax.broadcasted_iota(jnp.int32, (tile, 1), 0) + i * tile) < n
        col_ok = (lax.broadcasted_iota(jnp.int32, (1, tile), 1) + col0) < n
        neg = neg & row_ok & col_ok

    contrib = jnp.where(neg, margin_dist, 0.0)

    # Symmetry weight: diagonal tile counted once; off-diagonal tiles counted
    # twice (their mirror tile is never visited), except the half-offset
    # tiles for even T which are visited from both sides (weight 1 each).
    if dup_last:
        w = jnp.where((jj == 0) | (jj == K - 1), 1.0, 2.0)
    else:
        w = jnp.where(jj == 0, 1.0, 2.0)

    # Sublane-only reduction to a lane-dense (1, tile) partial.
    out_ref[...] += (w * jnp.sum(contrib, axis=0, keepdims=True)
                     ).reshape(1, 1, tile)


def _negative_pair_count(labels, n):
    """Exact number of (i, j) ordered pairs with labels[i] != labels[j]."""
    s = jnp.sort(labels.astype(jnp.int32))
    new_grp = jnp.concatenate(
        [jnp.ones((1,), jnp.int32), (s[1:] != s[:-1]).astype(jnp.int32)])
    gid = jnp.cumsum(new_grp) - 1
    counts = jnp.zeros((n,), jnp.int32).at[gid].add(1)
    same = jnp.sum(counts * counts)
    return jnp.int32(n * n) - same


def euclidean_distance_loss(embeddings, labels, margin=10.0, *, block=256):
    """Pallas equivalent of EuclieanDistanceLoss.forward.

    Returns (mean_loss: f32 scalar array, negative_pair_count: int32 scalar
    array).  Both stay on-device (no host sync).  `margin` must be a static
    Python number (it selects the margin / -dist formula at trace time).
    `block=512` is worthwhile on v5e/v6e (128 MiB VMEM) for large D.
    """
    n, d = embeddings.shape
    margin = float(margin) if margin else 0.0

    # 128-aligned square tiles.
    tile = _round_up(min(block, _round_up(n, 128)), 128)
    n_pad = _round_up(n, tile)
    d_pad = _round_up(d, 128)
    T = n_pad // tile
    K = T // 2 + 1                 # round-robin sweep length per row tile
    dup_last = (T % 2 == 0)        # half-offset tiles visited from both sides

    emb = embeddings               # keep native dtype (bf16 stays bf16)
    if (n_pad, d_pad) != (n, d):
        emb = jnp.pad(emb, ((0, n_pad - n), (0, d_pad - d)))
    emb_t = emb.T                  # (d_pad, n_pad): MXU-native column operand

    # Precomputed squared row norms, lane-major (1, n_pad) f32.
    e32 = emb.astype(jnp.float32)
    nrm = jnp.sum(e32 * e32, axis=1).reshape(1, n_pad)

    need_pad_rows = n_pad != n
    use_norm_sentinel = need_pad_rows and bool(margin)
    if use_norm_sentinel:
        # Huge norm => dist is huge => max(margin - dist, 0) == 0 for every
        # pair touching a padded row; pad/pad pairs share a label anyway.
        valid = (jnp.arange(n_pad) < n).reshape(1, n_pad)
        nrm = jnp.where(valid, nrm, jnp.float32(1e30))
    need_iota_mask = need_pad_rows and not margin

    lab = labels.astype(jnp.int32).reshape(1, n)
    if need_pad_rows:
        lab = jnp.pad(lab, ((0, 0), (0, n_pad - n)))

    kernel = functools.partial(
        _euclidean_loss_kernel,
        margin=margin, n=n, tile=tile, T=T, K=K, dup_last=dup_last,
        need_iota_mask=need_iota_mask)

    itemsize = int(jnp.dtype(emb.dtype).itemsize)
    steps = T * K
    cost = pl.CostEstimate(
        flops=int(2 * steps * tile * tile * d_pad),
        transcendentals=int(steps * tile * tile),
        bytes_accessed=int(steps * tile * d_pad * itemsize      # column tiles
                           + T * tile * d_pad * itemsize        # row tiles
                           + steps * tile * 8                   # labels+norms
                           + T * tile * 4))                     # partials

    # VMEM budget: 2 double-buffered (tile x d_pad) inputs + ~8 full-tile f32
    # temporaries; keep the limit <= 64 MiB so it is valid on v7x too.
    vmem_est = 4 * tile * d_pad * itemsize + 8 * tile * tile * 4 + 16 * tile * 4
    vmem_limit = min(64 * 1024 * 1024, max(32 * 1024 * 1024, 2 * vmem_est))

    partials = pl.pallas_call(
        kernel,
        out_shape=jax.ShapeDtypeStruct((T, 1, tile), jnp.float32),
        grid_spec=pltpu.PrefetchScalarGridSpec(
            num_scalar_prefetch=0,
            grid=(T, K),
            in_specs=[
                pl.BlockSpec((tile, d_pad), lambda i, jj: (i, 0)),             # rows
                pl.BlockSpec((d_pad, tile), lambda i, jj: (0, (i + jj) % T)),  # cols^T
                pl.BlockSpec((1, tile), lambda i, jj: (0, (i + jj) % T)),      # col labels
                pl.BlockSpec((1, tile), lambda i, jj: (0, (i + jj) % T)),      # col norms
            ],
            out_specs=pl.BlockSpec((1, 1, tile), lambda i, jj: (i, 0, 0)),
            scratch_shapes=[
                pltpu.VMEM((tile, 1), jnp.int32),    # row labels as a column
                pltpu.VMEM((tile, 1), jnp.float32),  # row norms as a column
            ],
        ),
        compiler_params=pltpu.CompilerParams(
            dimension_semantics=("parallel", "arbitrary"),
            vmem_limit_bytes=int(vmem_limit)),
        cost_estimate=cost,
    )(emb, emb_t, lab, nrm)

    total_sum = jnp.sum(partials)
    neg_count = _negative_pair_count(labels, n)       # exact int32, on-device
    mean_loss = total_sum / (neg_count.astype(jnp.float32) + 1e-08)
    return mean_loss, neg_count


def _reference(embeddings, labels, margin=10.0):
    # Pure-JAX reference mirroring the PyTorch module.
    e = embeddings.astype(jnp.float32)
    sq = jnp.sum(e * e, axis=1, keepdims=True)
    dist2 = sq + sq.T - 2.0 * (e @ e.T)
    dist = jnp.sqrt(jnp.maximum(dist2, 1e-12))
    margin_dist = jnp.maximum(margin - dist, 0.0) if margin else -dist
    neg = labels[:, None] != labels[None, :]
    masked = jnp.where(neg, margin_dist, 0.0)
    return masked.sum() / (neg.sum() + 1e-08), int(neg.sum())


if __name__ == "__main__":
    key = jax.random.PRNGKey(0)
    k1, k2, k3, k4, k5, k6 = jax.random.split(key, 6)

    # Case 1: tiny f32 batch (single tile, padded rows, margin branch).
    N, D = 8, 32
    emb = jax.random.normal(k1, (N, D), dtype=jnp.float32)
    lab = jax.random.randint(k2, (N,), 0, 3, dtype=jnp.int32)
    loss, cnt = euclidean_distance_loss(emb, lab, margin=10.0)
    jax.block_until_ready((loss, cnt))
    ref_loss, ref_cnt = _reference(emb, lab, margin=10.0)
    assert int(cnt) == ref_cnt, (int(cnt), ref_cnt)
    assert jnp.allclose(loss, ref_loss, rtol=1e-4, atol=1e-4), (loss, ref_loss)

    # Case 2: bf16 embeddings, even tile count (T=2, dup-last offset), padding.
    N2, D2 = 160, 96
    emb2 = (0.5 * jax.random.normal(k3, (N2, D2), dtype=jnp.float32)
            ).astype(jnp.bfloat16)
    lab2 = jax.random.randint(k4, (N2,), 0, 5, dtype=jnp.int32)
    loss2, cnt2 = euclidean_distance_loss(emb2, lab2, margin=10.0, block=128)
    jax.block_until_ready((loss2, cnt2))
    ref2, ref_cnt2 = _reference(emb2, lab2, margin=10.0)
    assert int(cnt2) == ref_cnt2, (int(cnt2), ref_cnt2)
    assert jnp.allclose(loss2, ref2, rtol=5e-2, atol=5e-2), (loss2, ref2)

    # Case 3: odd tile count (T=3), f32, padding.
    N3, D3 = 300, 64
    emb3 = jax.random.normal(k5, (N3, D3), dtype=jnp.float32)
    lab3 = jax.random.randint(k6, (N3,), 0, 7, dtype=jnp.int32)
    loss3, cnt3 = euclidean_distance_loss(emb3, lab3, margin=10.0, block=128)
    jax.block_until_ready((loss3, cnt3))
    ref3, ref_cnt3 = _reference(emb3, lab3, margin=10.0)
    assert int(cnt3) == ref_cnt3, (int(cnt3), ref_cnt3)
    assert jnp.allclose(loss3, ref3, rtol=1e-3, atol=1e-3), (loss3, ref3)

    # Case 4: margin == 0 branch (explicit cheap iota padding-mask path).
    loss4, cnt4 = euclidean_distance_loss(emb3, lab3, margin=0.0, block=128)
    jax.block_until_ready((loss4, cnt4))
    ref4, ref_cnt4 = _reference(emb3, lab3, margin=0.0)
    assert int(cnt4) == ref_cnt4, (int(cnt4), ref_cnt4)
    assert jnp.allclose(loss4, ref4, rtol=1e-3, atol=1e-3), (loss4, ref4)

    print("KERNEL_OK")
</pallas_src>

<mosaic_0001>
module attributes {stable_mosaic.version = 11 : i64} {
  func.func @_euclidean_loss_kernel(%arg0: i32, %arg1: i32, %arg2: memref<128x128xf32, #tpu.memory_space<vmem>>, %arg3: memref<128x128xf32, #tpu.memory_space<vmem>>, %arg4: memref<1x128xi32, #tpu.memory_space<vmem>>, %arg5: memref<1x128xf32, #tpu.memory_space<vmem>>, %arg6: memref<1x1x128xf32, #tpu.memory_space<vmem>>, %arg7: memref<128x1xi32, #tpu.memory_space<vmem>>, %arg8: memref<128x1xf32, #tpu.memory_space<vmem>>) attributes {dimension_semantics = [#tpu.dimension_semantics<parallel>, #tpu.dimension_semantics<arbitrary>], iteration_bounds = array<i64: 1, 1>, scalar_prefetch = 0 : i64, scratch_operands = 2 : i64, tpu.core_type = #tpu.core_type<tc>, window_params = [{transform_indices = @transform_0, window_bounds = array<i64: 128, 128>}, {transform_indices = @transform_1, window_bounds = array<i64: 128, 128>}, {transform_indices = @transform_2, window_bounds = array<i64: 1, 128>}, {transform_indices = @transform_3, window_bounds = array<i64: 1, 128>}, {transform_indices = @transform_4, window_bounds = array<i64: 1, 1, 128>}]} {
    %c0_i32 = arith.constant 0 : i32
    %0 = arith.cmpi eq, %arg1, %c0_i32 : i32
    %1 = arith.extui %0 : i1 to i32
    %c0_i32_0 = arith.constant 0 : i32
    %2 = arith.cmpi ne, %1, %c0_i32_0 : i32
    scf.if %2 {
      %cst_27 = arith.constant 0.000000e+00 : f32
      %38 = vector.broadcast %cst_27 : f32 to vector<1x1x128xf32>
      %c0_28 = arith.constant 0 : index
      %c0_29 = arith.constant 0 : index
      %c0_30 = arith.constant 0 : index
      %39 = vector.load %arg6[%c0_28, %c0_29, %c0_30] : memref<1x1x128xf32, #tpu.memory_space<vmem>>, vector<1x1x128xf32>
      tpu.vector_store %arg6[%c0_28, %c0_29, %c0_30], %38 {strides = array<i32>} : memref<1x1x128xf32, #tpu.memory_space<vmem>>, vector<1x1x128xf32>,
      %c0_31 = arith.constant 0 : index
      %c0_32 = arith.constant 0 : index
      %40 = vector.load %arg4[%c0_31, %c0_32] : memref<1x128xi32, #tpu.memory_space<vmem>>, vector<1x128xi32>
      %41 = tpu.transpose %40, [1, 0] : vector<1x128xi32> -> vector<128x1xi32>
      %c0_33 = arith.constant 0 : index
      %c0_34 = arith.constant 0 : index
      %42 = vector.load %arg7[%c0_33, %c0_34] : memref<128x1xi32, #tpu.memory_space<vmem>>, vector<128x1xi32>
      tpu.vector_store %arg7[%c0_33, %c0_34], %41 {strides = array<i32>} : memref<128x1xi32, #tpu.memory_space<vmem>>, vector<128x1xi32>,
      %c0_35 = arith.constant 0 : index
      %c0_36 = arith.constant 0 : index
      %43 = vector.load %arg5[%c0_35, %c0_36] : memref<1x128xf32, #tpu.memory_space<vmem>>, vector<1x128xf32>
      %44 = tpu.transpose %43, [1, 0] : vector<1x128xf32> -> vector<128x1xf32>
      %c0_37 = arith.constant 0 : index
      %c0_38 = arith.constant 0 : index
      %45 = vector.load %arg8[%c0_37, %c0_38] : memref<128x1xf32, #tpu.memory_space<vmem>>, vector<128x1xf32>
      tpu.vector_store %arg8[%c0_37, %c0_38], %44 {strides = array<i32>} : memref<128x1xf32, #tpu.memory_space<vmem>>, vector<128x1xf32>,
    } else {
    }
    %c0 = arith.constant 0 : index
    %c0_1 = arith.constant 0 : index
    %3 = vector.load %arg2[%c0, %c0_1] : memref<128x128xf32, #tpu.memory_space<vmem>>, vector<128x128xf32>
    %c0_2 = arith.constant 0 : index
    %c0_3 = arith.constant 0 : index
    %4 = vector.load %arg3[%c0_2, %c0_3] : memref<128x128xf32, #tpu.memory_space<vmem>>, vector<128x128xf32>
    %cst = arith.constant dense<0.000000e+00> : vector<128x128xf32>
    %5 = tpu.matmul %3, %4, %cst {dimension_numbers = #tpu.dot_dimension_numbers<[1], [0], [0], [1], [0, 0, 1, 1], [], []>} : vector<128x128xf32>, vector<128x128xf32>, vector<128x128xf32> -> vector<128x128xf32>
    %c0_4 = arith.constant 0 : index
    %c0_5 = arith.constant 0 : index
    %6 = vector.load %arg8[%c0_4, %c0_5] : memref<128x1xf32, #tpu.memory_space<vmem>>, vector<128x1xf32>
    %c0_6 = arith.constant 0 : index
    %c0_7 = arith.constant 0 : index
    %7 = vector.load %arg5[%c0_6, %c0_7] : memref<1x128xf32, #tpu.memory_space<vmem>>, vector<1x128xf32>
    %8 = vector.broadcast %6 : vector<128x1xf32> to vector<128x128xf32>
    %9 = vector.broadcast %7 : vector<1x128xf32> to vector<128x128xf32>
    %10 = arith.addf %8, %9 : vector<128x128xf32>
    %cst_8 = arith.constant 2.000000e+00 : f32
    %11 = vector.broadcast %cst_8 : f32 to vector<128x128xf32>
    %12 = arith.mulf %11, %5 : vector<128x128xf32>
    %13 = arith.subf %10, %12 : vector<128x128xf32>
    %cst_9 = arith.constant 9.99999996E-13 : f32
    %14 = vector.broadcast %cst_9 : f32 to vector<128x128xf32>
    %15 = arith.maximumf %13, %14 : vector<128x128xf32>
    %16 = math.sqrt %15 : vector<128x128xf32>
    %cst_10 = arith.constant 1.000000e+01 : f32
    %17 = vector.broadcast %cst_10 : f32 to vector<128x128xf32>
    %18 = arith.subf %17, %16 : vector<128x128xf32>
    %cst_11 = arith.constant 0.000000e+00 : f32
    %19 = vector.broadcast %cst_11 : f32 to vector<128x128xf32>
    %20 = arith.maximumf %18, %19 : vector<128x128xf32>
    %c0_12 = arith.constant 0 : index
    %c0_13 = arith.constant 0 : index
    %21 = vector.load %arg7[%c0_12, %c0_13] : memref<128x1xi32, #tpu.memory_space<vmem>>, vector<128x1xi32>
    %c0_14 = arith.constant 0 : index
    %c0_15 = arith.constant 0 : index
    %22 = vector.load %arg4[%c0_14, %c0_15] : memref<1x128xi32, #tpu.memory_space<vmem>>, vector<1x128xi32>
    %23 = vector.broadcast %21 : vector<128x1xi32> to vector<128x128xi32>
    %24 = vector.broadcast %22 : vector<1x128xi32> to vector<128x128xi32>
    %25 = arith.cmpi ne, %23, %24 : vector<128x128xi32>
    %cst_16 = arith.constant 0.000000e+00 : f32
    %26 = vector.broadcast %cst_16 : f32 to vector<128x128xf32>
    %27 = arith.select %25, %20, %26 : vector<128x128xi1>, vector<128x128xf32>
    %c0_i32_17 = arith.constant 0 : i32
    %28 = arith.cmpi eq, %arg1, %c0_i32_17 : i32
    %cst_18 = arith.constant 1.000000e+00 : f32
    %cst_19 = arith.constant 2.000000e+00 : f32
    %29 = arith.select %28, %cst_18, %cst_19 : f32
    %c0_20 = arith.constant 0 : index
    %c0_21 = arith.constant 0 : index
    %c0_22 = arith.constant 0 : index
    %30 = vector.load %arg6[%c0_20, %c0_21, %c0_22] : memref<1x1x128xf32, #tpu.memory_space<vmem>>, vector<1x1x128xf32>
    %cst_23 = arith.constant dense<0.000000e+00> : vector<128xf32>
    %31 = vector.multi_reduction <add>, %27, %cst_23 [0] : vector<128x128xf32> to vector<128xf32>
    %32 = vector.shape_cast %31 : vector<128xf32> to vector<1x128xf32>
    %33 = vector.broadcast %29 : f32 to vector<1x128xf32>
    %34 = arith.mulf %33, %32 : vector<1x128xf32>
    %35 = vector.shape_cast %34 : vector<1x128xf32> to vector<1x1x128xf32>
    %36 = arith.addf %30, %35 : vector<1x1x128xf32>
    %c0_24 = arith.constant 0 : index
    %c0_25 = arith.constant 0 : index
    %c0_26 = arith.constant 0 : index
    %37 = vector.load %arg6[%c0_24, %c0_25, %c0_26] : memref<1x1x128xf32, #tpu.memory_space<vmem>>, vector<1x1x128xf32>
    tpu.vector_store %arg6[%c0_24, %c0_25, %c0_26], %36 {strides = array<i32>} : memref<1x1x128xf32, #tpu.memory_space<vmem>>, vector<1x1x128xf32>,
    return
  }
  func.func @transform_0(%arg0: i32, %arg1: i32) -> (i32, i32) {
    %c0_i32 = arith.constant 0 : i32
    %c0_i32_0 = arith.constant 0 : i32
    return %arg0, %c0_i32 : i32, i32
  }
  func.func @transform_1(%arg0: i32, %arg1: i32) -> (i32, i32) {
    %0 = arith.addi %arg0, %arg1 : i32
    %c1_i32 = arith.constant 1 : i32
    %c0_i32 = arith.constant 0 : i32
    %1 = arith.cmpi eq, %c1_i32, %c0_i32 : i32
    %c1_i32_0 = arith.constant 1 : i32
    %2 = arith.select %1, %c1_i32_0, %c1_i32 : i32
    %3 = arith.remsi %0, %2 : i32
    %c0_i32_1 = arith.constant 0 : i32
    %4 = arith.cmpi ne, %3, %c0_i32_1 : i32
    %c0_i32_2 = arith.constant 0 : i32
    %5 = arith.cmpi slt, %3, %c0_i32_2 : i32
    %c0_i32_3 = arith.constant 0 : i32
    %6 = arith.cmpi slt, %2, %c0_i32_3 : i32
    %7 = arith.xori %5, %6 : i1
    %8 = arith.andi %7, %4 : i1
    %9 = arith.addi %3, %2 : i32
    %10 = arith.select %8, %9, %3 : i32
    %c0_i32_4 = arith.constant 0 : i32
    %c0_i32_5 = arith.constant 0 : i32
    return %c0_i32_4, %10 : i32, i32
  }
  func.func @transform_2(%arg0: i32, %arg1: i32) -> (i32, i32) {
    %0 = arith.addi %arg0, %arg1 : i32
    %c1_i32 = arith.constant 1 : i32
    %c0_i32 = arith.constant 0 : i32
    %1 = arith.cmpi eq, %c1_i32, %c0_i32 : i32
    %c1_i32_0 = arith.constant 1 : i32
    %2 = arith.select %1, %c1_i32_0, %c1_i32 : i32
    %3 = arith.remsi %0, %2 : i32
    %c0_i32_1 = arith.constant 0 : i32
    %4 = arith.cmpi ne, %3, %c0_i32_1 : i32
    %c0_i32_2 = arith.constant 0 : i32
    %5 = arith.cmpi slt, %3, %c0_i32_2 : i32
    %c0_i32_3 = arith.constant 0 : i32
    %6 = arith.cmpi slt, %2, %c0_i32_3 : i32
    %7 = arith.xori %5, %6 : i1
    %8 = arith.andi %7, %4 : i1
    %9 = arith.addi %3, %2 : i32
    %10 = arith.select %8, %9, %3 : i32
    %c0_i32_4 = arith.constant 0 : i32
    %c0_i32_5 = arith.constant 0 : i32
    return %c0_i32_4, %10 : i32, i32
  }
  func.func @transform_3(%arg0: i32, %arg1: i32) -> (i32, i32) {
    %0 = arith.addi %arg0, %arg1 : i32
    %c1_i32 = arith.constant 1 : i32
    %c0_i32 = arith.constant 0 : i32
    %1 = arith.cmpi eq, %c1_i32, %c0_i32 : i32
    %c1_i32_0 = arith.constant 1 : i32
    %2 = arith.select %1, %c1_i32_0, %c1_i32 : i32
    %3 = arith.remsi %0, %2 : i32
    %c0_i32_1 = arith.constant 0 : i32
    %4 = arith.cmpi ne, %3, %c0_i32_1 : i32
    %c0_i32_2 = arith.constant 0 : i32
    %5 = arith.cmpi slt, %3, %c0_i32_2 : i32
    %c0_i32_3 = arith.constant 0 : i32
    %6 = arith.cmpi slt, %2, %c0_i32_3 : i32
    %7 = arith.xori %5, %6 : i1
    %8 = arith.andi %7, %4 : i1
    %9 = arith.addi %3, %2 : i32
    %10 = arith.select %8, %9, %3 : i32
    %c0_i32_4 = arith.constant 0 : i32
    %c0_i32_5 = arith.constant 0 : i32
    return %c0_i32_4, %10 : i32, i32
  }
  func.func @transform_4(%arg0: i32, %arg1: i32) -> (i32, i32, i32) {
    %c0_i32 = arith.constant 0 : i32
    %c0_i32_0 = arith.constant 0 : i32
    %c0_i32_1 = arith.constant 0 : i32
    return %arg0, %c0_i32, %c0_i32_0 : i32, i32, i32
  }
}

</mosaic_0001>

<llo_original>
// kernel: tpu_custom_call.1
$region0: #{tpu_custom_call.1}
  #allocation0 [shape = 'u32[]', space=smem, size = 0x4, offset = 0x4, fixed_abs, tag = 'smem constant byte address 0x4 - core index']
  #allocation1 [shape = 'u32[144,128]{1,0:T(1,128)}', space=vmem, size = 0x12000, scoped, tag = 'internal scratch']
  #allocation2 [shape = 's32[128,1]{1,0:T(8,128)}', space=vmem, size = 0x10000, scoped, tag = 'scratch operand']
  #allocation3 [shape = 'f32[128,1]{1,0:T(8,128)}', space=vmem, size = 0x10000, scoped, tag = 'scratch operand']
  %s0 = inlined_call_operand.hbm [shape: f32[128,128], index: 0, kind: input, shape index: {}]
  %s1 = inlined_call_operand.hbm [shape: f32[128,128], index: 1, kind: input, shape index: {}]
  %s2 = inlined_call_operand.vmem [shape: s32[1,128], index: 2, kind: input, shape index: {}]
  %s3 = inlined_call_operand.vmem [shape: f32[1,128], index: 3, kind: input, shape index: {}]
  %s4 = inlined_call_operand.hbm [shape: f32[1,1,128], index: 4, kind: output, shape index: {}]
  %s5 = sld [smem:[#allocation0]]
  $region38: #{tpu_custom_call.1} parent=0
    _
  %s7 = ssub.s32 1, %s5
  %s8 = scalar_select 0, %s7, %s5
  $region1: #{tpu_custom_call.1} parent=0
    #allocation4 [shape = 'u8[65536]{0}', space=vmem, size = 0x10000, scoped, tag = 'input window, operand 0, single buffered']
    #allocation5 [shape = 's32[1]{0}', space=sflag, size = 0x4, scoped, tag = 'scoped memory for tpu_custom_call.1']
    #allocation6 [shape = 's32[1]{0}', space=sflag, size = 0x4, scoped, tag = 'scoped memory for tpu_custom_call.1']
    #allocation7 [shape = 'u8[65536]{0}', space=vmem, size = 0x10000, scoped, tag = 'input window, operand 1, single buffered']
    #allocation8 [shape = 's32[1]{0}', space=sflag, size = 0x4, scoped, tag = 'scoped memory for tpu_custom_call.1']
    #allocation9 [shape = 'u8[512]{0}', space=vmem, size = 0x400, scoped, tag = 'output window, operand 0, single buffered']
    %9 = vsyncpa [#allocation5], 0
    %10 = vsyncpa [#allocation8], 0
    %11 = vsyncpa [#allocation6], 0
    // Predicated region
    $region2: #{tpu_custom_call.1} parent=1 // pred_check
      _
    $region3: #{tpu_custom_call.1} parent=1 // pred_check_branch
      %13 = sbr.rel (0) target = $region5
    $region4: #{tpu_custom_call.1} parent=1 // pred_region
      %s15 = ssub.s32 2048, 2048
      %16 = vsyncadd [#allocation5], %s15
      %s17 = sshll.u32 [#allocation4], 4
      %s18 = int_to_ptr.vmem [resolvable:$true] %s17
      %23 = dma.hbm_to_vmem [thread:$0]  %s0, 2048, %s18, [#allocation5], 128, 128, 8
    $region5: #{tpu_custom_call.1} parent=1 // pred_fallthru
      _
    // Predicated region
    $region6: #{tpu_custom_call.1} parent=1 // pred_check
      _
    $region7: #{tpu_custom_call.1} parent=1 // pred_check_branch
      %25 = sbr.rel (0) target = $region9
    $region8: #{tpu_custom_call.1} parent=1 // pred_region
      %s27 = ssub.s32 2048, 2048
      %28 = vsyncadd [#allocation8], %s27
      %s29 = sshll.u32 [#allocation7], 4
      %s30 = int_to_ptr.vmem [resolvable:$true] %s29
      %35 = dma.hbm_to_vmem [thread:$0]  %s1, 2048, %s30, [#allocation8], 128, 128, 8
    $region9: #{tpu_custom_call.1} parent=1 // pred_fallthru
      _
    // Predicated region
    $region10: #{tpu_custom_call.1} parent=1 // pred_check
      _
    $region11: #{tpu_custom_call.1} parent=1 // pred_check_branch
      %37 = sbr.rel (0) target = $region13
    $region12: #{tpu_custom_call.1} parent=1 // pred_region
      _
    $region13: #{tpu_custom_call.1} parent=1 // pred_fallthru
      _
    // Predicated region
    $region14: #{tpu_custom_call.1} parent=1 // pred_check
      _
    $region15: #{tpu_custom_call.1} parent=1 // pred_check_branch
      %39 = sbr.rel (0) target = $region17
    $region16: #{tpu_custom_call.1} parent=1 // pred_region
      _
    $region17: #{tpu_custom_call.1} parent=1 // pred_fallthru
      _
    // Predicated region
    $region18: #{tpu_custom_call.1} parent=1 // pred_check
      _
    $region19: #{tpu_custom_call.1} parent=1 // pred_check_branch
      %41 = sbr.rel (0) target = $region21
    $region20: #{tpu_custom_call.1} parent=1 // pred_region
      %42 = dma.done [#allocation5], 2048
    $region21: #{tpu_custom_call.1} parent=1 // pred_fallthru
      _
    // Predicated region
    $region22: #{tpu_custom_call.1} parent=1 // pred_check
      _
    $region23: #{tpu_custom_call.1} parent=1 // pred_check_branch
      %44 = sbr.rel (0) target = $region25
    $region24: #{tpu_custom_call.1} parent=1 // pred_region
      %45 = dma.done [#allocation8], 2048
    $region25: #{tpu_custom_call.1} parent=1 // pred_fallthru
      _
    %p46 = scmp.eq.s32.totalorder 0, 0
    // Predicated region
    $region26: #{tpu_custom_call.1} parent=1 // pred_check
      %p47 = pneg %p46
    $region27: #{tpu_custom_call.1} parent=1 // pred_check_branch
      %49 = sbr.rel (%p47) target = $region29
    $region28: #{tpu_custom_call.1} parent=1 // pred_region
      %50 = vst [vmem:[#allocation9] sm:$0x1] 0.0
      %v51 = vld [vmem:[%s2] sm:$0x1]
      %52 = vxpose.xlu0.b32.start [1/16] %v51, 128
      %53 = vxpose.xlu0.b32.cont [2/16] 0, 128
      %54 = vxpose.xlu0.b32.cont [3/16] 0, 128
      %55 = vxpose.xlu0.b32.cont [4/16] 0, 128
      %56 = vxpose.xlu0.b32.cont [5/16] 0, 128
      %57 = vxpose.xlu0.b32.cont [6/16] 0, 128
      %58 = vxpose.xlu0.b32.cont [7/16] 0, 128
      %59 = vxpose.xlu0.b32.cont [8/16] 0, 128
      %60 = vxpose.xlu0.b32.cont [9/16] 0, 128
      %61 = vxpose.xlu0.b32.cont [10/16] 0, 128
      %62 = vxpose.xlu0.b32.cont [11/16] 0, 128
      %63 = vxpose.xlu0.b32.cont [12/16] 0, 128
      %64 = vxpose.xlu0.b32.cont [13/16] 0, 128
      %65 = vxpose.xlu0.b32.cont [14/16] 0, 128
      %66 = vxpose.xlu0.b32.cont [15/16] 0, 128
      %67 = vxpose.xlu0.b32.end [16/16] 0, 128
      %v68 = vpop.trf.xlu0
      %v69 = vpop.trf.xlu0
      %v70 = vpop.trf.xlu0
      %v71 = vpop.trf.xlu0
      %v72 = vpop.trf.xlu0
      %v73 = vpop.trf.xlu0
      %v74 = vpop.trf.xlu0
      %v75 = vpop.trf.xlu0
      %v76 = vpop.trf.xlu0
      %v77 = vpop.trf.xlu0
      %v78 = vpop.trf.xlu0
      %v79 = vpop.trf.xlu0
      %v80 = vpop.trf.xlu0
      %v81 = vpop.trf.xlu0
      %v82 = vpop.trf.xlu0
      %v83 = vpop.trf.xlu0
      %vm84 = vcmask 7168
      %85 = vst.msk [vmem:[#allocation2] sm:$0xff] %vm84, %v68
      %86 = vst.msk [vmem:[#allocation2 + $0x8] sm:$0xff] %vm84, %v69
      %87 = vst.msk [vmem:[#allocation2 + $0x10] sm:$0xff] %vm84, %v70
      %88 = vst.msk [vmem:[#allocation2 + $0x18] sm:$0xff] %vm84, %v71
      %89 = vst.msk [vmem:[#allocation2 + $0x20] sm:$0xff] %vm84, %v72
      %90 = vst.msk [vmem:[#allocation2 + $0x28] sm:$0xff] %vm84, %v73
      %91 = vst.msk [vmem:[#allocation2 + $0x30] sm:$0xff] %vm84, %v74
      %92 = vst.msk [vmem:[#allocation2 + $0x38] sm:$0xff] %vm84, %v75
      %93 = vst.msk [vmem:[#allocation2 + $0x40] sm:$0xff] %vm84, %v76
      %94 = vst.msk [vmem:[#allocation2 + $0x48] sm:$0xff] %vm84, %v77
      %95 = vst.msk [vmem:[#allocation2 + $0x50] sm:$0xff] %vm84, %v78
      %96 = vst.msk [vmem:[#allocation2 + $0x58] sm:$0xff] %vm84, %v79
      %97 = vst.msk [vmem:[#allocation2 + $0x60] sm:$0xff] %vm84, %v80
      %98 = vst.msk [vmem:[#allocation2 + $0x68] sm:$0xff] %vm84, %v81
      %99 = vst.msk [vmem:[#allocation2 + $0x70] sm:$0xff] %vm84, %v82
      %100 = vst.msk [vmem:[#allocation2 + $0x78] sm:$0xff] %vm84, %v83
      %v101 = vld [vmem:[%s3] sm:$0x1]
      %102 = vxpose.xlu0.b32.start [1/16] %v101, 128
      %103 = vxpose.xlu0.b32.cont [2/16] 0.0, 128
      %104 = vxpose.xlu0.b32.cont [3/16] 0.0, 128
      %105 = vxpose.xlu0.b32.cont [4/16] 0.0, 128
      %106 = vxpose.xlu0.b32.cont [5/16] 0.0, 128
      %107 = vxpose.xlu0.b32.cont [6/16] 0.0, 128
      %108 = vxpose.xlu0.b32.cont [7/16] 0.0, 128
      %109 = vxpose.xlu0.b32.cont [8/16] 0.0, 128
      %110 = vxpose.xlu0.b32.cont [9/16] 0.0, 128
      %111 = vxpose.xlu0.b32.cont [10/16] 0.0, 128
      %112 = vxpose.xlu0.b32.cont [11/16] 0.0, 128
      %113 = vxpose.xlu0.b32.cont [12/16] 0.0, 128
      %114 = vxpose.xlu0.b32.cont [13/16] 0.0, 128
      %115 = vxpose.xlu0.b32.cont [14/16] 0.0, 128
      %116 = vxpose.xlu0.b32.cont [15/16] 0.0, 128
      %117 = vxpose.xlu0.b32.end [16/16] 0.0, 128
      %v118 = vpop.trf.xlu0
      %v119 = vpop.trf.xlu0
      %v120 = vpop.trf.xlu0
      %v121 = vpop.trf.xlu0
      %v122 = vpop.trf.xlu0
      %v123 = vpop.trf.xlu0
      %v124 = vpop.trf.xlu0
      %v125 = vpop.trf.xlu0
      %v126 = vpop.trf.xlu0
      %v127 = vpop.trf.xlu0
      %v128 = vpop.trf.xlu0
      %v129 = vpop.trf.xlu0
      %v130 = vpop.trf.xlu0
      %v131 = vpop.trf.xlu0
      %v132 = vpop.trf.xlu0
      %v133 = vpop.trf.xlu0
      %134 = vst.msk [vmem:[#allocation3] sm:$0xff] %vm84, %v118
      %135 = vst.msk [vmem:[#allocation3 + $0x8] sm:$0xff] %vm84, %v119
      %136 = vst.msk [vmem:[#allocation3 + $0x10] sm:$0xff] %vm84, %v120
      %137 = vst.msk [vmem:[#allocation3 + $0x18] sm:$0xff] %vm84, %v121
      %138 = vst.msk [vmem:[#allocation3 + $0x20] sm:$0xff] %vm84, %v122
      %139 = vst.msk [vmem:[#allocation3 + $0x28] sm:$0xff] %vm84, %v123
      %140 = vst.msk [vmem:[#allocation3 + $0x30] sm:$0xff] %vm84, %v124
      %141 = vst.msk [vmem:[#allocation3 + $0x38] sm:$0xff] %vm84, %v125
      %142 = vst.msk [vmem:[#allocation3 + $0x40] sm:$0xff] %vm84, %v126
      %143 = vst.msk [vmem:[#allocation3 + $0x48] sm:$0xff] %vm84, %v127
      %144 = vst.msk [vmem:[#allocation3 + $0x50] sm:$0xff] %vm84, %v128
      %145 = vst.msk [vmem:[#allocation3 + $0x58] sm:$0xff] %vm84, %v129
      %146 = vst.msk [vmem:[#allocation3 + $0x60] sm:$0xff] %vm84, %v130
      %147 = vst.msk [vmem:[#allocation3 + $0x68] sm:$0xff] %vm84, %v131
      %148 = vst.msk [vmem:[#allocation3 + $0x70] sm:$0xff] %vm84, %v132
      %149 = vst.msk [vmem:[#allocation3 + $0x78] sm:$0xff] %vm84, %v133
    $region29: #{tpu_custom_call.1} parent=1 // pred_fallthru
      _
    %v150 = vld [vmem:[#allocation4] sm:$0xff]
    %v151 = vld [vmem:[#allocation4 + $0x8] sm:$0xff]
    %v152 = vld [vmem:[#allocation4 + $0x10] sm:$0xff]
    %v153 = vld [vmem:[#allocation4 + $0x18] sm:$0xff]
    %v154 = vld [vmem:[#allocation4 + $0x20] sm:$0xff]
    %v155 = vld [vmem:[#allocation4 + $0x28] sm:$0xff]
    %v156 = vld [vmem:[#allocation4 + $0x30] sm:$0xff]
    %v157 = vld [vmem:[#allocation4 + $0x38] sm:$0xff]
    %v158 = vld [vmem:[#allocation4 + $0x40] sm:$0xff]
    %v159 = vld [vmem:[#allocation4 + $0x48] sm:$0xff]
    %v160 = vld [vmem:[#allocation4 + $0x50] sm:$0xff]
    %v161 = vld [vmem:[#allocation4 + $0x58] sm:$0xff]
    %v162 = vld [vmem:[#allocation4 + $0x60] sm:$0xff]
    %v163 = vld [vmem:[#allocation4 + $0x68] sm:$0xff]
    %v164 = vld [vmem:[#allocation4 + $0x70] sm:$0xff]
    %v165 = vld [vmem:[#allocation4 + $0x78] sm:$0xff]
    %v166 = vld [vmem:[#allocation7] sm:$0xff]
    %v167 = vld [vmem:[#allocation7 + $0x8] sm:$0xff]
    %v168 = vld [vmem:[#allocation7 + $0x10] sm:$0xff]
    %v169 = vld [vmem:[#allocation7 + $0x18] sm:$0xff]
    %v170 = vld [vmem:[#allocation7 + $0x20] sm:$0xff]
    %v171 = vld [vmem:[#allocation7 + $0x28] sm:$0xff]
    %v172 = vld [vmem:[#allocation7 + $0x30] sm:$0xff]
    %v173 = vld [vmem:[#allocation7 + $0x38] sm:$0xff]
    %v174 = vld [vmem:[#allocation7 + $0x40] sm:$0xff]
    %v175 = vld [vmem:[#allocation7 + $0x48] sm:$0xff]
    %v176 = vld [vmem:[#allocation7 + $0x50] sm:$0xff]
    %v177 = vld [vmem:[#allocation7 + $0x58] sm:$0xff]
    %v178 = vld [vmem:[#allocation7 + $0x60] sm:$0xff]
    %v179 = vld [vmem:[#allocation7 + $0x68] sm:$0xff]
    %v180 = vld [vmem:[#allocation7 + $0x70] sm:$0xff]
    %v181 = vld [vmem:[#allocation7 + $0x78] sm:$0xff]
    %182 = vmatprep.subr.mxu0 0.0
    %183 = vmatpush1.msra.mxu0 %v181
    %184 = vmatprep.subr.mxu0 0.0
    %185 = vmatpush1.msra.mxu0 %v180
    %186 = vmatprep.subr.mxu0 0.0
    %187 = vmatpush1.msra.mxu0 %v179
    %188 = vmatprep.subr.mxu0 0.0
    %189 = vmatpush1.msra.mxu0 %v178
    %190 = vmatprep.subr.mxu0 0.0
    %191 = vmatpush1.msra.mxu0 %v177
    %192 = vmatprep.subr.mxu0 0.0
    %193 = vmatpush1.msra.mxu0 %v176
    %194 = vmatprep.subr.mxu0 0.0
    %195 = vmatpush1.msra.mxu0 %v175
    %196 = vmatprep.subr.mxu0 0.0
    %197 = vmatpush1.msra.mxu0 %v174
    %198 = vmatprep.subr.mxu0 0.0
    %199 = vmatpush1.msra.mxu0 %v173
    %200 = vmatprep.subr.mxu0 0.0
    %201 = vmatpush1.msra.mxu0 %v172
    %202 = vmatprep.subr.mxu0 0.0
    %203 = vmatpush1.msra.mxu0 %v171
    %204 = vmatprep.subr.mxu0 0.0
    %205 = vmatpush1.msra.mxu0 %v170
    %206 = vmatprep.subr.mxu0 0.0
    %207 = vmatpush1.msra.mxu0 %v169
    %208 = vmatprep.subr.mxu0 0.0
    %209 = vmatpush1.msra.mxu0 %v168
    %210 = vmatprep.subr.mxu0 0.0
    %211 = vmatpush1.msra.mxu0 %v167
    %212 = vmatprep.subr.mxu0 0.0
    %213 = vmatpush1.msra.mxu0 %v166
    %214 = vmatprep.subr.mxu0 0.0
    %215 = vmatpush2.msra.mxu0 0.0
    %216 = vmatprep.subr.mxu0 0.0
    %217 = vmatpush2.msra.mxu0 0.0
    %218 = vmatprep.subr.mxu0 0.0
    %219 = vmatpush2.msra.mxu0 0.0
    %220 = vmatprep.subr.mxu0 0.0
    %221 = vmatpush2.msra.mxu0 0.0
    %222 = vmatprep.subr.mxu0 0.0
    %223 = vmatpush2.msra.mxu0 0.0
    %224 = vmatprep.subr.mxu0 0.0
    %225 = vmatpush2.msra.mxu0 0.0
    %226 = vmatprep.subr.mxu0 0.0
    %227 = vmatpush2.msra.mxu0 0.0
    %228 = vmatprep.subr.mxu0 0.0
    %229 = vmatpush2.msra.mxu0 0.0
    %230 = vmatprep.subr.mxu0 0.0
    %231 = vmatpush2.msra.mxu0 0.0
    %232 = vmatprep.subr.mxu0 0.0
    %233 = vmatpush2.msra.mxu0 0.0
    %234 = vmatprep.subr.mxu0 0.0
    %235 = vmatpush2.msra.mxu0 0.0
    %236 = vmatprep.subr.mxu0 0.0
    %237 = vmatpush2.msra.mxu0 0.0
    %238 = vmatprep.subr.mxu0 0.0
    %239 = vmatpush2.msra.mxu0 0.0
    %240 = vmatprep.subr.mxu0 0.0
    %241 = vmatpush2.msra.mxu0 0.0
    %242 = vmatprep.subr.mxu0 0.0
    %243 = vmatpush2.msra.mxu0 0.0
    %244 = vmatprep.subr.mxu0 0.0
    %245 = vmatpush2.msra.mxu0 0.0
    %246 = vmatprep.mubr.f32.mxu0 0.0
    %247 = vmatmul.mubr.f32.gmra.mxu0 %v150
    %v248 = vpop.f32.mrf.mxu0
    %v249 = vadd.f32 0.0, %v248
    %v250 = vpop.f32.mrf.mxu0
    %251 = vmatprep.mubr.f32.mxu0 0.0
    %252 = vmatmul.mubr.f32.gmra.mxu0 %v151
    %v253 = vpop.f32.mrf.mxu0
    %v254 = vadd.f32 0.0, %v253
    %v255 = vpop.f32.mrf.mxu0
    %256 = vmatprep.mubr.f32.mxu0 0.0
    %257 = vmatmul.mubr.f32.gmra.mxu0 %v152
    %v258 = vpop.f32.mrf.mxu0
    %v259 = vadd.f32 0.0, %v258
    %v260 = vpop.f32.mrf.mxu0
    %261 = vmatprep.mubr.f32.mxu0 0.0
    %262 = vmatmul.mubr.f32.gmra.mxu0 %v153
    %v263 = vpop.f32.mrf.mxu0
    %v264 = vadd.f32 0.0, %v263
    %v265 = vpop.f32.mrf.mxu0
    %266 = vmatprep.mubr.f32.mxu0 0.0
    %267 = vmatmul.mubr.f32.gmra.mxu0 %v154
    %v268 = vpop.f32.mrf.mxu0
    %v269 = vadd.f32 0.0, %v268
    %v270 = vpop.f32.mrf.mxu0
    %271 = vmatprep.mubr.f32.mxu0 0.0
    %272 = vmatmul.mubr.f32.gmra.mxu0 %v155
    %v273 = vpop.f32.mrf.mxu0
    %v274 = vadd.f32 0.0, %v273
    %v275 = vpop.f32.mrf.mxu0
    %276 = vmatprep.mubr.f32.mxu0 0.0
    %277 = vmatmul.mubr.f32.gmra.mxu0 %v156
    %v278 = vpop.f32.mrf.mxu0
    %v279 = vadd.f32 0.0, %v278
    %v280 = vpop.f32.mrf.mxu0
    %281 = vmatprep.mubr.f32.mxu0 0.0
    %282 = vmatmul.mubr.f32.gmra.mxu0 %v157
    %v283 = vpop.f32.mrf.mxu0
    %v284 = vadd.f32 0.0, %v283
    %v285 = vpop.f32.mrf.mxu0
    %286 = vmatprep.mubr.f32.mxu0 0.0
    %287 = vmatmul.mubr.f32.gmra.mxu0 %v158
    %v288 = vpop.f32.mrf.mxu0
    %v289 = vadd.f32 0.0, %v288
    %v290 = vpop.f32.mrf.mxu0
    %291 = vmatprep.mubr.f32.mxu0 0.0
    %292 = vmatmul.mubr.f32.gmra.mxu0 %v159
    %v293 = vpop.f32.mrf.mxu0
    %v294 = vadd.f32 0.0, %v293
    %v295 = vpop.f32.mrf.mxu0
    %296 = vmatprep.mubr.f32.mxu0 0.0
    %297 = vmatmul.mubr.f32.gmra.mxu0 %v160
    %v298 = vpop.f32.mrf.mxu0
    %v299 = vadd.f32 0.0, %v298
    %v300 = vpop.f32.mrf.mxu0
    %301 = vmatprep.mubr.f32.mxu0 0.0
    %302 = vmatmul.mubr.f32.gmra.mxu0 %v161
    %v303 = vpop.f32.mrf.mxu0
    %v304 = vadd.f32 0.0, %v303
    %v305 = vpop.f32.mrf.mxu0
    %306 = vmatprep.mubr.f32.mxu0 0.0
    %307 = vmatmul.mubr.f32.gmra.mxu0 %v162
    %v308 = vpop.f32.mrf.mxu0
    %v309 = vadd.f32 0.0, %v308
    %v310 = vpop.f32.mrf.mxu0
    %311 = vmatprep.mubr.f32.mxu0 0.0
    %312 = vmatmul.mubr.f32.gmra.mxu0 %v163
    %v313 = vpop.f32.mrf.mxu0
    %v314 = vadd.f32 0.0, %v313
    %v315 = vpop.f32.mrf.mxu0
    %316 = vmatprep.mubr.f32.mxu0 0.0
    %317 = vmatmul.mubr.f32.gmra.mxu0 %v164
    %v318 = vpop.f32.mrf.mxu0
    %v319 = vadd.f32 0.0, %v318
    %v320 = vpop.f32.mrf.mxu0
    %321 = vmatprep.mubr.f32.mxu0 0.0
    %322 = vmatmul.mubr.f32.gmra.mxu0 %v165
    %v323 = vpop.f32.mrf.mxu0
    %v324 = vadd.f32 0.0, %v323
    %v325 = vpop.f32.mrf.mxu0
    %326 = vdwg.mxu0
    %v327 = vld [vmem:[#allocation3] sm:$0xff]
    %v328 = vld [vmem:[#allocation3 + $0x8] sm:$0xff]
    %v329 = vld [vmem:[#allocation3 + $0x10] sm:$0xff]
    %v330 = vld [vmem:[#allocation3 + $0x18] sm:$0xff]
    %v331 = vld [vmem:[#allocation3 + $0x20] sm:$0xff]
    %v332 = vld [vmem:[#allocation3 + $0x28] sm:$0xff]
    %v333 = vld [vmem:[#allocation3 + $0x30] sm:$0xff]
    %v334 = vld [vmem:[#allocation3 + $0x38] sm:$0xff]
    %v335 = vld [vmem:[#allocation3 + $0x40] sm:$0xff]
    %v336 = vld [vmem:[#allocation3 + $0x48] sm:$0xff]
    %v337 = vld [vmem:[#allocation3 + $0x50] sm:$0xff]
    %v338 = vld [vmem:[#allocation3 + $0x58] sm:$0xff]
    %v339 = vld [vmem:[#allocation3 + $0x60] sm:$0xff]
    %v340 = vld [vmem:[#allocation3 + $0x68] sm:$0xff]
    %v341 = vld [vmem:[#allocation3 + $0x70] sm:$0xff]
    %v342 = vld [vmem:[#allocation3 + $0x78] sm:$0xff]
    %v343 = vld [vmem:[%s3] sm:$0x1]
    %345 = vset.pattern.permute.xlu0 0
    %346 = vperm.xlu0 %345, %v327
    %v347 = vpop.permute.xlu0 %346
    %350 = vset.pattern.permute.xlu0 0
    %351 = vperm.xlu0 %350, %v328
    %v352 = vpop.permute.xlu0 %351
    %355 = vset.pattern.permute.xlu0 0
    %356 = vperm.xlu0 %355, %v329
    %v357 = vpop.permute.xlu0 %356
    %360 = vset.pattern.permute.xlu0 0
    %361 = vperm.xlu0 %360, %v330
    %v362 = vpop.permute.xlu0 %361
    %365 = vset.pattern.permute.xlu0 0
    %366 = vperm.xlu0 %365, %v331
    %v367 = vpop.permute.xlu0 %366
    %370 = vset.pattern.permute.xlu0 0
    %371 = vperm.xlu0 %370, %v332
    %v372 = vpop.permute.xlu0 %371
    %375 = vset.pattern.permute.xlu0 0
    %376 = vperm.xlu0 %375, %v333
    %v377 = vpop.permute.xlu0 %376
    %380 = vset.pattern.permute.xlu0 0
    %381 = vperm.xlu0 %380, %v334
    %v382 = vpop.permute.xlu0 %381
    %385 = vset.pattern.permute.xlu0 0
    %386 = vperm.xlu0 %385, %v335
    %v387 = vpop.permute.xlu0 %386
    %390 = vset.pattern.permute.xlu0 0
    %391 = vperm.xlu0 %390, %v336
    %v392 = vpop.permute.xlu0 %391
    %395 = vset.pattern.permute.xlu0 0
    %396 = vperm.xlu0 %395, %v337
    %v397 = vpop.permute.xlu0 %396
    %400 = vset.pattern.permute.xlu0 0
    %401 = vperm.xlu0 %400, %v338
    %v402 = vpop.permute.xlu0 %401
    %405 = vset.pattern.permute.xlu0 0
    %406 = vperm.xlu0 %405, %v339
    %v407 = vpop.permute.xlu0 %406
    %410 = vset.pattern.permute.xlu0 0
    %411 = vperm.xlu0 %410, %v340
    %v412 = vpop.permute.xlu0 %411
    %415 = vset.pattern.permute.xlu0 0
    %416 = vperm.xlu0 %415, %v341
    %v417 = vpop.permute.xlu0 %416
    %420 = vset.pattern.permute.xlu0 0
    %421 = vperm.xlu0 %420, %v342
    %v422 = vpop.permute.xlu0 %421
    %v425 = vlaneseq
    %v426 = vshrl.u32 %v425, 7
    %v427 = vsub.s32 0, %v426
    %v428 = vrot.slane %v343, %v427
    %v430 = vadd.f32 %v347, %v428
    %v431 = vadd.f32 %v352, %v428
    %v432 = vadd.f32 %v357, %v428
    %v433 = vadd.f32 %v362, %v428
    %v434 = vadd.f32 %v367, %v428
    %v435 = vadd.f32 %v372, %v428
    %v436 = vadd.f32 %v377, %v428
    %v437 = vadd.f32 %v382, %v428
    %v438 = vadd.f32 %v387, %v428
    %v439 = vadd.f32 %v392, %v428
    %v440 = vadd.f32 %v397, %v428
    %v441 = vadd.f32 %v402, %v428
    %v442 = vadd.f32 %v407, %v428
    %v443 = vadd.f32 %v412, %v428
    %v444 = vadd.f32 %v417, %v428
    %v445 = vadd.f32 %v422, %v428
    %v446 = vmul.f32 %v249, 2.0
    %v447 = vmul.f32 %v254, 2.0
    %v448 = vmul.f32 %v259, 2.0
    %v449 = vmul.f32 %v264, 2.0
    %v450 = vmul.f32 %v269, 2.0
    %v451 = vmul.f32 %v274, 2.0
    %v452 = vmul.f32 %v279, 2.0
    %v453 = vmul.f32 %v284, 2.0
    %v454 = vmul.f32 %v289, 2.0
    %v455 = vmul.f32 %v294, 2.0
    %v456 = vmul.f32 %v299, 2.0
    %v457 = vmul.f32 %v304, 2.0
    %v458 = vmul.f32 %v309, 2.0
    %v459 = vmul.f32 %v314, 2.0
    %v460 = vmul.f32 %v319, 2.0
    %v461 = vmul.f32 %v324, 2.0
    %v462 = vsub.f32 %v430, %v446
    %v463 = vsub.f32 %v431, %v447
    %v464 = vsub.f32 %v432, %v448
    %v465 = vsub.f32 %v433, %v449
    %v466 = vsub.f32 %v434, %v450
    %v467 = vsub.f32 %v435, %v451
    %v468 = vsub.f32 %v436, %v452
    %v469 = vsub.f32 %v437, %v453
    %v470 = vsub.f32 %v438, %v454
    %v471 = vsub.f32 %v439, %v455
    %v472 = vsub.f32 %v440, %v456
    %v473 = vsub.f32 %v441, %v457
    %v474 = vsub.f32 %v442, %v458
    %v475 = vsub.f32 %v443, %v459
    %v476 = vsub.f32 %v444, %v460
    %v477 = vsub.f32 %v445, %v461
    %v478 = vmax.f32 %v462, 1e-12
    %v479 = vmax.f32 %v463, 1e-12
    %v480 = vmax.f32 %v464, 1e-12
    %v481 = vmax.f32 %v465, 1e-12
    %v482 = vmax.f32 %v466, 1e-12
    %v483 = vmax.f32 %v467, 1e-12
    %v484 = vmax.f32 %v468, 1e-12
    %v485 = vmax.f32 %v469, 1e-12
    %v486 = vmax.f32 %v470, 1e-12
    %v487 = vmax.f32 %v471, 1e-12
    %v488 = vmax.f32 %v472, 1e-12
    %v489 = vmax.f32 %v473, 1e-12
    %v490 = vmax.f32 %v474, 1e-12
    %v491 = vmax.f32 %v475, 1e-12
    %v492 = vmax.f32 %v476, 1e-12
    %v493 = vmax.f32 %v477, 1e-12
    %v494 = vrsqrt.pop %v478
    %v495 = vmul.f32 %v478, %v494
    %vm496 = vcmp.eq.f32.partialorder %v478, inf
    %v497 = vsel %vm496, %v478, %v495
    %vm498 = vcmp.eq.f32.partialorder %v478, 0.0
    %v499 = vand.u32 %v478, 2147483648
    %v500 = vsel %vm498, %v499, %v497
    %v501 = vrsqrt.pop %v479
    %v502 = vmul.f32 %v479, %v501
    %vm503 = vcmp.eq.f32.partialorder %v479, inf
    %v504 = vsel %vm503, %v479, %v502
    %vm505 = vcmp.eq.f32.partialorder %v479, 0.0
    %v506 = vand.u32 %v479, 2147483648
    %v507 = vsel %vm505, %v506, %v504
    %v508 = vrsqrt.pop %v480
    %v509 = vmul.f32 %v480, %v508
    %vm510 = vcmp.eq.f32.partialorder %v480, inf
    %v511 = vsel %vm510, %v480, %v509
    %vm512 = vcmp.eq.f32.partialorder %v480, 0.0
    %v513 = vand.u32 %v480, 2147483648
    %v514 = vsel %vm512, %v513, %v511
    %v515 = vrsqrt.pop %v481
    %v516 = vmul.f32 %v481, %v515
    %vm517 = vcmp.eq.f32.partialorder %v481, inf
    %v518 = vsel %vm517, %v481, %v516
    %vm519 = vcmp.eq.f32.partialorder %v481, 0.0
    %v520 = vand.u32 %v481, 2147483648
    %v521 = vsel %vm519, %v520, %v518
    %v522 = vrsqrt.pop %v482
    %v523 = vmul.f32 %v482, %v522
    %vm524 = vcmp.eq.f32.partialorder %v482, inf
    %v525 = vsel %vm524, %v482, %v523
    %vm526 = vcmp.eq.f32.partialorder %v482, 0.0
    %v527 = vand.u32 %v482, 2147483648
    %v528 = vsel %vm526, %v527, %v525
    %v529 = vrsqrt.pop %v483
    %v530 = vmul.f32 %v483, %v529
    %vm531 = vcmp.eq.f32.partialorder %v483, inf
    %v532 = vsel %vm531, %v483, %v530
    %vm533 = vcmp.eq.f32.partialorder %v483, 0.0
    %v534 = vand.u32 %v483, 2147483648
    %v535 = vsel %vm533, %v534, %v532
    %v536 = vrsqrt.pop %v484
    %v537 = vmul.f32 %v484, %v536
    %vm538 = vcmp.eq.f32.partialorder %v484, inf
    %v539 = vsel %vm538, %v484, %v537
    %vm540 = vcmp.eq.f32.partialorder %v484, 0.0
    %v541 = vand.u32 %v484, 2147483648
    %v542 = vsel %vm540, %v541, %v539
    %v543 = vrsqrt.pop %v485
    %v544 = vmul.f32 %v485, %v543
    %vm545 = vcmp.eq.f32.partialorder %v485, inf
    %v546 = vsel %vm545, %v485, %v544
    %vm547 = vcmp.eq.f32.partialorder %v485, 0.0
    %v548 = vand.u32 %v485, 2147483648
    %v549 = vsel %vm547, %v548, %v546
    %v550 = vrsqrt.pop %v486
    %v551 = vmul.f32 %v486, %v550
    %vm552 = vcmp.eq.f32.partialorder %v486, inf
    %v553 = vsel %vm552, %v486, %v551
    %vm554 = vcmp.eq.f32.partialorder %v486, 0.0
    %v555 = vand.u32 %v486, 2147483648
    %v556 = vsel %vm554, %v555, %v553
    %v557 = vrsqrt.pop %v487
    %v558 = vmul.f32 %v487, %v557
    %vm559 = vcmp.eq.f32.partialorder %v487, inf
    %v560 = vsel %vm559, %v487, %v558
    %vm561 = vcmp.eq.f32.partialorder %v487, 0.0
    %v562 = vand.u32 %v487, 2147483648
    %v563 = vsel %vm561, %v562, %v560
    %v564 = vrsqrt.pop %v488
    %v565 = vmul.f32 %v488, %v564
    %vm566 = vcmp.eq.f32.partialorder %v488, inf
    %v567 = vsel %vm566, %v488, %v565
    %vm568 = vcmp.eq.f32.partialorder %v488, 0.0
    %v569 = vand.u32 %v488, 2147483648
    %v570 = vsel %vm568, %v569, %v567
    %v571 = vrsqrt.pop %v489
    %v572 = vmul.f32 %v489, %v571
    %vm573 = vcmp.eq.f32.partialorder %v489, inf
    %v574 = vsel %vm573, %v489, %v572
    %vm575 = vcmp.eq.f32.partialorder %v489, 0.0
    %v576 = vand.u32 %v489, 2147483648
    %v577 = vsel %vm575, %v576, %v574
    %v578 = vrsqrt.pop %v490
    %v579 = vmul.f32 %v490, %v578
    %vm580 = vcmp.eq.f32.partialorder %v490, inf
    %v581 = vsel %vm580, %v490, %v579
    %vm582 = vcmp.eq.f32.partialorder %v490, 0.0
    %v583 = vand.u32 %v490, 2147483648
    %v584 = vsel %vm582, %v583, %v581
    %v585 = vrsqrt.pop %v491
    %v586 = vmul.f32 %v491, %v585
    %vm587 = vcmp.eq.f32.partialorder %v491, inf
    %v588 = vsel %vm587, %v491, %v586
    %vm589 = vcmp.eq.f32.partialorder %v491, 0.0
    %v590 = vand.u32 %v491, 2147483648
    %v591 = vsel %vm589, %v590, %v588
    %v592 = vrsqrt.pop %v492
    %v593 = vmul.f32 %v492, %v592
    %vm594 = vcmp.eq.f32.partialorder %v492, inf
    %v595 = vsel %vm594, %v492, %v593
    %vm596 = vcmp.eq.f32.partialorder %v492, 0.0
    %v597 = vand.u32 %v492, 2147483648
    %v598 = vsel %vm596, %v597, %v595
    %v599 = vrsqrt.pop %v493
    %v600 = vmul.f32 %v493, %v599
    %vm601 = vcmp.eq.f32.partialorder %v493, inf
    %v602 = vsel %vm601, %v493, %v600
    %vm603 = vcmp.eq.f32.partialorder %v493, 0.0
    %v604 = vand.u32 %v493, 2147483648
    %v605 = vsel %vm603, %v604, %v602
    %v606 = vsub.f32 10.0, %v500
    %v607 = vsub.f32 10.0, %v507
    %v608 = vsub.f32 10.0, %v514
    %v609 = vsub.f32 10.0, %v521
    %v610 = vsub.f32 10.0, %v528
    %v611 = vsub.f32 10.0, %v535
    %v612 = vsub.f32 10.0, %v542
    %v613 = vsub.f32 10.0, %v549
    %v614 = vsub.f32 10.0, %v556
    %v615 = vsub.f32 10.0, %v563
    %v616 = vsub.f32 10.0, %v570
    %v617 = vsub.f32 10.0, %v577
    %v618 = vsub.f32 10.0, %v584
    %v619 = vsub.f32 10.0, %v591
    %v620 = vsub.f32 10.0, %v598
    %v621 = vsub.f32 10.0, %v605
    %v622 = vmax.f32 %v606, 0.0
    %v623 = vmax.f32 %v607, 0.0
    %v624 = vmax.f32 %v608, 0.0
    %v625 = vmax.f32 %v609, 0.0
    %v626 = vmax.f32 %v610, 0.0
    %v627 = vmax.f32 %v611, 0.0
    %v628 = vmax.f32 %v612, 0.0
    %v629 = vmax.f32 %v613, 0.0
    %v630 = vmax.f32 %v614, 0.0
    %v631 = vmax.f32 %v615, 0.0
    %v632 = vmax.f32 %v616, 0.0
    %v633 = vmax.f32 %v617, 0.0
    %v634 = vmax.f32 %v618, 0.0
    %v635 = vmax.f32 %v619, 0.0
    %v636 = vmax.f32 %v620, 0.0
    %v637 = vmax.f32 %v621, 0.0
    %v638 = vld [vmem:[#allocation2] sm:$0xff]
    %v639 = vld [vmem:[#allocation2 + $0x8] sm:$0xff]
    %v640 = vld [vmem:[#allocation2 + $0x10] sm:$0xff]
    %v641 = vld [vmem:[#allocation2 + $0x18] sm:$0xff]
    %v642 = vld [vmem:[#allocation2 + $0x20] sm:$0xff]
    %v643 = vld [vmem:[#allocation2 + $0x28] sm:$0xff]
    %v644 = vld [vmem:[#allocation2 + $0x30] sm:$0xff]
    %v645 = vld [vmem:[#allocation2 + $0x38] sm:$0xff]
    %v646 = vld [vmem:[#allocation2 + $0x40] sm:$0xff]
    %v647 = vld [vmem:[#allocation2 + $0x48] sm:$0xff]
    %v648 = vld [vmem:[#allocation2 + $0x50] sm:$0xff]
    %v649 = vld [vmem:[#allocation2 + $0x58] sm:$0xff]
    %v650 = vld [vmem:[#allocation2 + $0x60] sm:$0xff]
    %v651 = vld [vmem:[#allocation2 + $0x68] sm:$0xff]
    %v652 = vld [vmem:[#allocation2 + $0x70] sm:$0xff]
    %v653 = vld [vmem:[#allocation2 + $0x78] sm:$0xff]
    %v654 = vld [vmem:[%s2] sm:$0x1]
    %655 = vset.pattern.permute.xlu0 0
    %656 = vperm.xlu0 %655, %v638
    %v657 = vpop.permute.xlu0 %656
    %658 = vset.pattern.permute.xlu0 0
    %659 = vperm.xlu0 %658, %v639
    %v660 = vpop.permute.xlu0 %659
    %661 = vset.pattern.permute.xlu0 0
    %662 = vperm.xlu0 %661, %v640
    %v663 = vpop.permute.xlu0 %662
    %664 = vset.pattern.permute.xlu0 0
    %665 = vperm.xlu0 %664, %v641
    %v666 = vpop.permute.xlu0 %665
    %667 = vset.pattern.permute.xlu0 0
    %668 = vperm.xlu0 %667, %v642
    %v669 = vpop.permute.xlu0 %668
    %670 = vset.pattern.permute.xlu0 0
    %671 = vperm.xlu0 %670, %v643
    %v672 = vpop.permute.xlu0 %671
    %673 = vset.pattern.permute.xlu0 0
    %674 = vperm.xlu0 %673, %v644
    %v675 = vpop.permute.xlu0 %674
    %676 = vset.pattern.permute.xlu0 0
    %677 = vperm.xlu0 %676, %v645
    %v678 = vpop.permute.xlu0 %677
    %679 = vset.pattern.permute.xlu0 0
    %680 = vperm.xlu0 %679, %v646
    %v681 = vpop.permute.xlu0 %680
    %682 = vset.pattern.permute.xlu0 0
    %683 = vperm.xlu0 %682, %v647
    %v684 = vpop.permute.xlu0 %683
    %685 = vset.pattern.permute.xlu0 0
    %686 = vperm.xlu0 %685, %v648
    %v687 = vpop.permute.xlu0 %686
    %688 = vset.pattern.permute.xlu0 0
    %689 = vperm.xlu0 %688, %v649
    %v690 = vpop.permute.xlu0 %689
    %691 = vset.pattern.permute.xlu0 0
    %692 = vperm.xlu0 %691, %v650
    %v693 = vpop.permute.xlu0 %692
    %694 = vset.pattern.permute.xlu0 0
    %695 = vperm.xlu0 %694, %v651
    %v696 = vpop.permute.xlu0 %695
    %697 = vset.pattern.permute.xlu0 0
    %698 = vperm.xlu0 %697, %v652
    %v699 = vpop.permute.xlu0 %698
    %700 = vset.pattern.permute.xlu0 0
    %701 = vperm.xlu0 %700, %v653
    %v702 = vpop.permute.xlu0 %701
    %v703 = vlaneseq
    %v704 = vshrl.u32 %v703, 7
    %v705 = vsub.s32 0, %v704
    %v706 = vrot.slane %v654, %v705
    %vm707 = vcmp.ne.s32.totalorder %v657, %v706
    %vm708 = vcmp.ne.s32.totalorder %v660, %v706
    %vm709 = vcmp.ne.s32.totalorder %v663, %v706
    %vm710 = vcmp.ne.s32.totalorder %v666, %v706
    %vm711 = vcmp.ne.s32.totalorder %v669, %v706
    %vm712 = vcmp.ne.s32.totalorder %v672, %v706
    %vm713 = vcmp.ne.s32.totalorder %v675, %v706
    %vm714 = vcmp.ne.s32.totalorder %v678, %v706
    %vm715 = vcmp.ne.s32.totalorder %v681, %v706
    %vm716 = vcmp.ne.s32.totalorder %v684, %v706
    %vm717 = vcmp.ne.s32.totalorder %v687, %v706
    %vm718 = vcmp.ne.s32.totalorder %v690, %v706
    %vm719 = vcmp.ne.s32.totalorder %v693, %v706
    %vm720 = vcmp.ne.s32.totalorder %v696, %v706
    %vm721 = vcmp.ne.s32.totalorder %v699, %v706
    %vm722 = vcmp.ne.s32.totalorder %v702, %v706
    %v723 = vsel %vm707, %v622, 0.0
    %v724 = vsel %vm708, %v623, 0.0
    %v725 = vsel %vm709, %v624, 0.0
    %v726 = vsel %vm710, %v625, 0.0
    %v727 = vsel %vm711, %v626, 0.0
    %v728 = vsel %vm712, %v627, 0.0
    %v729 = vsel %vm713, %v628, 0.0
    %v730 = vsel %vm714, %v629, 0.0
    %v731 = vsel %vm715, %v630, 0.0
    %v732 = vsel %vm716, %v631, 0.0
    %v733 = vsel %vm717, %v632, 0.0
    %v734 = vsel %vm718, %v633, 0.0
    %v735 = vsel %vm719, %v634, 0.0
    %v736 = vsel %vm720, %v635, 0.0
    %v737 = vsel %vm721, %v636, 0.0
    %v738 = vsel %vm722, %v637, 0.0
    %s739 = scalar_select %p46, 1.0, 2.0
    %v740 = vld [vmem:[#allocation9] sm:$0x1]
    %v741 = vadd.f32 %v723, %v724
    %v742 = vadd.f32 %v741, %v725
    %v743 = vadd.f32 %v742, %v726
    %v744 = vadd.f32 %v743, %v727
    %v745 = vadd.f32 %v744, %v728
    %v746 = vadd.f32 %v745, %v729
    %v747 = vadd.f32 %v746, %v730
    %v748 = vadd.f32 %v747, %v731
    %v749 = vadd.f32 %v748, %v732
    %v750 = vadd.f32 %v749, %v733
    %v751 = vadd.f32 %v750, %v734
    %v752 = vadd.f32 %v751, %v735
    %v753 = vadd.f32 %v752, %v736
    %v754 = vadd.f32 %v753, %v737
    %v755 = vadd.f32 %v754, %v738
    %v756 = vrot.slane %v755, 4
    %v757 = vadd.f32 %v755, %v756
    %v758 = vrot.slane %v757, 2
    %v759 = vadd.f32 %v757, %v758
    %v760 = vrot.slane %v759, 1
    %v761 = vadd.f32 %v759, %v760
    %v762 = vstv %s739
    %v763 = vmul.f32 %v762, %v761
    %v764 = vadd.f32 %v740, %v763
    %765 = vst [vmem:[#allocation9] sm:$0x1] %v764
    // Predicated region
    $region30: #{tpu_custom_call.1} parent=1 // pred_check
      _
    $region31: #{tpu_custom_call.1} parent=1 // pred_check_branch
      %767 = sbr.rel (0) target = $region33
    $region32: #{tpu_custom_call.1} parent=1 // pred_region
      %s769 = ssub.s32 16, 16
      %770 = vsyncadd [#allocation6], %s769
      %s772 = sshll.u32 [#allocation9], 4
      %s773 = int_to_ptr.vmem [resolvable:$true] %s772
      %775 = dma.vmem_to_hbm [thread:$0]  %s773, 16, %s4, [#allocation6]
    $region33: #{tpu_custom_call.1} parent=1 // pred_fallthru
      _
    // Predicated region
    $region34: #{tpu_custom_call.1} parent=1 // pred_check
      _
    $region35: #{tpu_custom_call.1} parent=1 // pred_check_branch
      %777 = sbr.rel (0) target = $region37
    $region36: #{tpu_custom_call.1} parent=1 // pred_region
      %778 = dma.done [#allocation6], 16
    $region37: #{tpu_custom_call.1} parent=1 // pred_fallthru
      _
    %779 = vsyncpa [#allocation5], 1
    %780 = vsyncpa [#allocation8], 1
    %781 = vsyncpa [#allocation6], 1

</llo_original>
